<compile_context>
chip_gen: v7x
topology: tpu7x:2x2x1
jax: 0.10.0
libtpu: 0.0.40
codegen_flags: <defaults>
</compile_context>

<pallas_src>
import jax
import jax.numpy as jnp
from jax.experimental import pallas as pl
from jax.experimental.pallas import tpu as pltpu


# Packed-parameter layout (32 f32 scalars total):
#   w1[5] | b1[5] | w2[15] (row-major (3,5)) | b2[3] | w3[3] | b3[1]
W1_OFF, B1_OFF, W2_OFF, B2_OFF, W3_OFF, B3_OFF = 0, 5, 10, 25, 28, 31


def mlp_kernel(p_ref, x_ref, o_ref):
    # x: (tile_r, 128) f32 — each element is one batch sample's scalar feature.
    x = x_ref[...]

    # fc1 + ReLU interleaved with fc2 accumulation:
    #   acc[o] = b2[o] + sum_j relu(x*w1[j] + b1[j]) * W2[o, j]
    acc = [None, None, None]
    for j in range(5):
        h = jnp.maximum(x * p_ref[W1_OFF + j] + p_ref[B1_OFF + j], 0.0)
        for o in range(3):
            w2_oj = p_ref[W2_OFF + o * 5 + j]
            if j == 0:
                acc[o] = h * w2_oj + p_ref[B2_OFF + o]   # bias folded into first MAC
            else:
                acc[o] = acc[o] + h * w2_oj

    # fc2 ReLU + fc3: y = b3 + sum_o relu(acc[o]) * w3[o]   (b3 folded into first term)
    y = jnp.maximum(acc[0], 0.0) * p_ref[W3_OFF + 0] + p_ref[B3_OFF]
    y = y + jnp.maximum(acc[1], 0.0) * p_ref[W3_OFF + 1]
    y = y + jnp.maximum(acc[2], 0.0) * p_ref[W3_OFF + 2]

    o_ref[...] = y.astype(o_ref.dtype)


def _round_up(n, m):
    return ((n + m - 1) // m) * m


def mlp_forward(x, params, max_tile_rows=4096):
    """x: (B, 1) f32. params: flattened (w1, b1, w2, b2, w3, b3). Returns (B, 1)."""
    w1, b1, w2, b2, w3, b3 = params
    packed = jnp.concatenate([w1, b1, w2, b2, w3, b3]).astype(jnp.float32)  # exactly 32

    B = x.shape[0]
    if B == 0:  # degenerate batch guard
        return jnp.zeros((0, 1), x.dtype)

    # Lane-dense layout: batch -> lanes. rows_needed = ceil(B / 128).
    rows_needed = -(-B // 128)

    # Row tile: multiple of 8 sublanes, big enough to amortize grid-step
    # overhead, small enough that the "parallel" grid has >= 2 steps when
    # there is enough work (keeps both v7x TensorCores busy).
    tile_r = _round_up(rows_needed, 8)
    if rows_needed > 8:
        tile_r = min(tile_r, _round_up(-(-rows_needed // 2), 8))
    tile_r = max(8, min(tile_r, max_tile_rows))

    rows = _round_up(rows_needed, tile_r)
    padded = rows * 128

    # Fast path: when B == rows*128 the reshapes are free (no extra HBM pass).
    xf = x.reshape(-1)
    if padded != B:
        xf = jnp.pad(xf, (0, padded - B))
    xf = xf.reshape(rows, 128)

    smem = pl.BlockSpec(memory_space=pltpu.MemorySpace.SMEM)
    tile = pl.BlockSpec((tile_r, 128), lambda i: (i, 0))

    out = pl.pallas_call(
        mlp_kernel,
        out_shape=jax.ShapeDtypeStruct((rows, 128), jnp.float32),
        grid=(rows // tile_r,),
        in_specs=[smem, tile],
        out_specs=tile,
        compiler_params=pltpu.CompilerParams(
            dimension_semantics=("parallel",)),
    )(packed, xf)

    out_flat = out.reshape(-1)
    if padded != B:
        out_flat = out_flat[:B]
    return out_flat.reshape(B, 1)


def init_params(key):
    # Mimics nn.Linear's uniform(-1/sqrt(fan_in), 1/sqrt(fan_in)) init.
    # Weights stored flattened row-major in PyTorch (out_features, in_features) order.
    def linear(key, fan_in, fan_out):
        kw, kb = jax.random.split(key)
        bound = 1.0 / (fan_in ** 0.5)
        w = jax.random.uniform(kw, (fan_out * fan_in,), jnp.float32, -bound, bound)
        b = jax.random.uniform(kb, (fan_out,), jnp.float32, -bound, bound)
        return w, b

    k1, k2, k3 = jax.random.split(key, 3)
    w1, b1 = linear(k1, 1, 5)   # fc1: (5,1) -> (5,)
    w2, b2 = linear(k2, 5, 3)   # fc2: (3,5) -> (15,)
    w3, b3 = linear(k3, 3, 1)   # fc3: (1,3) -> (3,)
    return w1, b1, w2, b2, w3, b3


def reference_forward(x, params):
    w1, b1, w2, b2, w3, b3 = params
    W1 = w1.reshape(5, 1)   # PyTorch (out, in)
    W2 = w2.reshape(3, 5)
    W3 = w3.reshape(1, 3)
    h1 = jnp.maximum(x @ W1.T + b1, 0.0)
    h2 = jnp.maximum(h1 @ W2.T + b2, 0.0)
    return h2 @ W3.T + b3


if __name__ == "__main__":
    key = jax.random.PRNGKey(0)
    kx, kp = jax.random.split(key)

    batch = 8
    x = jax.random.normal(kx, (batch, 1), jnp.float32)   # featureSet: (N, 1)
    params = init_params(kp)

    out = mlp_forward(x, params)
    out = jax.block_until_ready(out)

    ref = reference_forward(x, params)
    assert out.shape == (batch, 1)
    assert jnp.allclose(out, ref, atol=1e-5, rtol=1e-5)

    # Larger, lane-aligned batch exercises the fast path and the multi-step grid.
    big = 1024
    xb = jax.random.normal(kx, (big, 1), jnp.float32)
    outb = jax.block_until_ready(mlp_forward(xb, params))
    refb = reference_forward(xb, params)
    assert outb.shape == (big, 1)
    assert jnp.allclose(outb, refb, atol=1e-5, rtol=1e-5)

    print("KERNEL_OK")
</pallas_src>

<mosaic_0001>
module attributes {stable_mosaic.version = 11 : i64} {
  func.func @mlp_kernel(%arg0: i32, %arg1: memref<32xf32, #tpu.memory_space<smem>>, %arg2: memref<8x128xf32, #tpu.memory_space<vmem>>, %arg3: memref<8x128xf32, #tpu.memory_space<vmem>>) attributes {dimension_semantics = [#tpu.dimension_semantics<parallel>], iteration_bounds = array<i64: 1>, scalar_prefetch = 0 : i64, scratch_operands = 0 : i64, tpu.core_type = #tpu.core_type<tc>, window_params = [{transform_indices = @transform_0, window_bounds = array<i64: 32>}, {transform_indices = @transform_1, window_bounds = array<i64: 8, 128>}, {transform_indices = @transform_2, window_bounds = array<i64: 8, 128>}]} {
    %c0 = arith.constant 0 : index
    %c0_0 = arith.constant 0 : index
    %0 = vector.load %arg2[%c0, %c0_0] : memref<8x128xf32, #tpu.memory_space<vmem>>, vector<8x128xf32>
    %c0_1 = arith.constant 0 : index
    %1 = memref.load %arg1[%c0_1] : memref<32xf32, #tpu.memory_space<smem>>
    %2 = vector.broadcast %1 : f32 to vector<8x128xf32>
    %3 = arith.mulf %0, %2 : vector<8x128xf32>
    %c5 = arith.constant 5 : index
    %4 = memref.load %arg1[%c5] : memref<32xf32, #tpu.memory_space<smem>>
    %5 = vector.broadcast %4 : f32 to vector<8x128xf32>
    %6 = arith.addf %3, %5 : vector<8x128xf32>
    %cst = arith.constant 0.000000e+00 : f32
    %7 = vector.broadcast %cst : f32 to vector<8x128xf32>
    %8 = arith.maximumf %6, %7 : vector<8x128xf32>
    %c10 = arith.constant 10 : index
    %9 = memref.load %arg1[%c10] : memref<32xf32, #tpu.memory_space<smem>>
    %10 = vector.broadcast %9 : f32 to vector<8x128xf32>
    %11 = arith.mulf %8, %10 : vector<8x128xf32>
    %c25 = arith.constant 25 : index
    %12 = memref.load %arg1[%c25] : memref<32xf32, #tpu.memory_space<smem>>
    %13 = vector.broadcast %12 : f32 to vector<8x128xf32>
    %14 = arith.addf %11, %13 : vector<8x128xf32>
    %c15 = arith.constant 15 : index
    %15 = memref.load %arg1[%c15] : memref<32xf32, #tpu.memory_space<smem>>
    %16 = vector.broadcast %15 : f32 to vector<8x128xf32>
    %17 = arith.mulf %8, %16 : vector<8x128xf32>
    %c26 = arith.constant 26 : index
    %18 = memref.load %arg1[%c26] : memref<32xf32, #tpu.memory_space<smem>>
    %19 = vector.broadcast %18 : f32 to vector<8x128xf32>
    %20 = arith.addf %17, %19 : vector<8x128xf32>
    %c20 = arith.constant 20 : index
    %21 = memref.load %arg1[%c20] : memref<32xf32, #tpu.memory_space<smem>>
    %22 = vector.broadcast %21 : f32 to vector<8x128xf32>
    %23 = arith.mulf %8, %22 : vector<8x128xf32>
    %c27 = arith.constant 27 : index
    %24 = memref.load %arg1[%c27] : memref<32xf32, #tpu.memory_space<smem>>
    %25 = vector.broadcast %24 : f32 to vector<8x128xf32>
    %26 = arith.addf %23, %25 : vector<8x128xf32>
    %c1 = arith.constant 1 : index
    %27 = memref.load %arg1[%c1] : memref<32xf32, #tpu.memory_space<smem>>
    %28 = vector.broadcast %27 : f32 to vector<8x128xf32>
    %29 = arith.mulf %0, %28 : vector<8x128xf32>
    %c6 = arith.constant 6 : index
    %30 = memref.load %arg1[%c6] : memref<32xf32, #tpu.memory_space<smem>>
    %31 = vector.broadcast %30 : f32 to vector<8x128xf32>
    %32 = arith.addf %29, %31 : vector<8x128xf32>
    %cst_2 = arith.constant 0.000000e+00 : f32
    %33 = vector.broadcast %cst_2 : f32 to vector<8x128xf32>
    %34 = arith.maximumf %32, %33 : vector<8x128xf32>
    %c11 = arith.constant 11 : index
    %35 = memref.load %arg1[%c11] : memref<32xf32, #tpu.memory_space<smem>>
    %36 = vector.broadcast %35 : f32 to vector<8x128xf32>
    %37 = arith.mulf %34, %36 : vector<8x128xf32>
    %38 = arith.addf %14, %37 : vector<8x128xf32>
    %c16 = arith.constant 16 : index
    %39 = memref.load %arg1[%c16] : memref<32xf32, #tpu.memory_space<smem>>
    %40 = vector.broadcast %39 : f32 to vector<8x128xf32>
    %41 = arith.mulf %34, %40 : vector<8x128xf32>
    %42 = arith.addf %20, %41 : vector<8x128xf32>
    %c21 = arith.constant 21 : index
    %43 = memref.load %arg1[%c21] : memref<32xf32, #tpu.memory_space<smem>>
    %44 = vector.broadcast %43 : f32 to vector<8x128xf32>
    %45 = arith.mulf %34, %44 : vector<8x128xf32>
    %46 = arith.addf %26, %45 : vector<8x128xf32>
    %c2 = arith.constant 2 : index
    %47 = memref.load %arg1[%c2] : memref<32xf32, #tpu.memory_space<smem>>
    %48 = vector.broadcast %47 : f32 to vector<8x128xf32>
    %49 = arith.mulf %0, %48 : vector<8x128xf32>
    %c7 = arith.constant 7 : index
    %50 = memref.load %arg1[%c7] : memref<32xf32, #tpu.memory_space<smem>>
    %51 = vector.broadcast %50 : f32 to vector<8x128xf32>
    %52 = arith.addf %49, %51 : vector<8x128xf32>
    %cst_3 = arith.constant 0.000000e+00 : f32
    %53 = vector.broadcast %cst_3 : f32 to vector<8x128xf32>
    %54 = arith.maximumf %52, %53 : vector<8x128xf32>
    %c12 = arith.constant 12 : index
    %55 = memref.load %arg1[%c12] : memref<32xf32, #tpu.memory_space<smem>>
    %56 = vector.broadcast %55 : f32 to vector<8x128xf32>
    %57 = arith.mulf %54, %56 : vector<8x128xf32>
    %58 = arith.addf %38, %57 : vector<8x128xf32>
    %c17 = arith.constant 17 : index
    %59 = memref.load %arg1[%c17] : memref<32xf32, #tpu.memory_space<smem>>
    %60 = vector.broadcast %59 : f32 to vector<8x128xf32>
    %61 = arith.mulf %54, %60 : vector<8x128xf32>
    %62 = arith.addf %42, %61 : vector<8x128xf32>
    %c22 = arith.constant 22 : index
    %63 = memref.load %arg1[%c22] : memref<32xf32, #tpu.memory_space<smem>>
    %64 = vector.broadcast %63 : f32 to vector<8x128xf32>
    %65 = arith.mulf %54, %64 : vector<8x128xf32>
    %66 = arith.addf %46, %65 : vector<8x128xf32>
    %c3 = arith.constant 3 : index
    %67 = memref.load %arg1[%c3] : memref<32xf32, #tpu.memory_space<smem>>
    %68 = vector.broadcast %67 : f32 to vector<8x128xf32>
    %69 = arith.mulf %0, %68 : vector<8x128xf32>
    %c8 = arith.constant 8 : index
    %70 = memref.load %arg1[%c8] : memref<32xf32, #tpu.memory_space<smem>>
    %71 = vector.broadcast %70 : f32 to vector<8x128xf32>
    %72 = arith.addf %69, %71 : vector<8x128xf32>
    %cst_4 = arith.constant 0.000000e+00 : f32
    %73 = vector.broadcast %cst_4 : f32 to vector<8x128xf32>
    %74 = arith.maximumf %72, %73 : vector<8x128xf32>
    %c13 = arith.constant 13 : index
    %75 = memref.load %arg1[%c13] : memref<32xf32, #tpu.memory_space<smem>>
    %76 = vector.broadcast %75 : f32 to vector<8x128xf32>
    %77 = arith.mulf %74, %76 : vector<8x128xf32>
    %78 = arith.addf %58, %77 : vector<8x128xf32>
    %c18 = arith.constant 18 : index
    %79 = memref.load %arg1[%c18] : memref<32xf32, #tpu.memory_space<smem>>
    %80 = vector.broadcast %79 : f32 to vector<8x128xf32>
    %81 = arith.mulf %74, %80 : vector<8x128xf32>
    %82 = arith.addf %62, %81 : vector<8x128xf32>
    %c23 = arith.constant 23 : index
    %83 = memref.load %arg1[%c23] : memref<32xf32, #tpu.memory_space<smem>>
    %84 = vector.broadcast %83 : f32 to vector<8x128xf32>
    %85 = arith.mulf %74, %84 : vector<8x128xf32>
    %86 = arith.addf %66, %85 : vector<8x128xf32>
    %c4 = arith.constant 4 : index
    %87 = memref.load %arg1[%c4] : memref<32xf32, #tpu.memory_space<smem>>
    %88 = vector.broadcast %87 : f32 to vector<8x128xf32>
    %89 = arith.mulf %0, %88 : vector<8x128xf32>
    %c9 = arith.constant 9 : index
    %90 = memref.load %arg1[%c9] : memref<32xf32, #tpu.memory_space<smem>>
    %91 = vector.broadcast %90 : f32 to vector<8x128xf32>
    %92 = arith.addf %89, %91 : vector<8x128xf32>
    %cst_5 = arith.constant 0.000000e+00 : f32
    %93 = vector.broadcast %cst_5 : f32 to vector<8x128xf32>
    %94 = arith.maximumf %92, %93 : vector<8x128xf32>
    %c14 = arith.constant 14 : index
    %95 = memref.load %arg1[%c14] : memref<32xf32, #tpu.memory_space<smem>>
    %96 = vector.broadcast %95 : f32 to vector<8x128xf32>
    %97 = arith.mulf %94, %96 : vector<8x128xf32>
    %98 = arith.addf %78, %97 : vector<8x128xf32>
    %c19 = arith.constant 19 : index
    %99 = memref.load %arg1[%c19] : memref<32xf32, #tpu.memory_space<smem>>
    %100 = vector.broadcast %99 : f32 to vector<8x128xf32>
    %101 = arith.mulf %94, %100 : vector<8x128xf32>
    %102 = arith.addf %82, %101 : vector<8x128xf32>
    %c24 = arith.constant 24 : index
    %103 = memref.load %arg1[%c24] : memref<32xf32, #tpu.memory_space<smem>>
    %104 = vector.broadcast %103 : f32 to vector<8x128xf32>
    %105 = arith.mulf %94, %104 : vector<8x128xf32>
    %106 = arith.addf %86, %105 : vector<8x128xf32>
    %cst_6 = arith.constant 0.000000e+00 : f32
    %107 = vector.broadcast %cst_6 : f32 to vector<8x128xf32>
    %108 = arith.maximumf %98, %107 : vector<8x128xf32>
    %c28 = arith.constant 28 : index
    %109 = memref.load %arg1[%c28] : memref<32xf32, #tpu.memory_space<smem>>
    %110 = vector.broadcast %109 : f32 to vector<8x128xf32>
    %111 = arith.mulf %108, %110 : vector<8x128xf32>
    %c31 = arith.constant 31 : index
    %112 = memref.load %arg1[%c31] : memref<32xf32, #tpu.memory_space<smem>>
    %113 = vector.broadcast %112 : f32 to vector<8x128xf32>
    %114 = arith.addf %111, %113 : vector<8x128xf32>
    %cst_7 = arith.constant 0.000000e+00 : f32
    %115 = vector.broadcast %cst_7 : f32 to vector<8x128xf32>
    %116 = arith.maximumf %102, %115 : vector<8x128xf32>
    %c29 = arith.constant 29 : index
    %117 = memref.load %arg1[%c29] : memref<32xf32, #tpu.memory_space<smem>>
    %118 = vector.broadcast %117 : f32 to vector<8x128xf32>
    %119 = arith.mulf %116, %118 : vector<8x128xf32>
    %120 = arith.addf %114, %119 : vector<8x128xf32>
    %cst_8 = arith.constant 0.000000e+00 : f32
    %121 = vector.broadcast %cst_8 : f32 to vector<8x128xf32>
    %122 = arith.maximumf %106, %121 : vector<8x128xf32>
    %c30 = arith.constant 30 : index
    %123 = memref.load %arg1[%c30] : memref<32xf32, #tpu.memory_space<smem>>
    %124 = vector.broadcast %123 : f32 to vector<8x128xf32>
    %125 = arith.mulf %122, %124 : vector<8x128xf32>
    %126 = arith.addf %120, %125 : vector<8x128xf32>
    %c0_9 = arith.constant 0 : index
    %c0_10 = arith.constant 0 : index
    %127 = vector.load %arg3[%c0_9, %c0_10] : memref<8x128xf32, #tpu.memory_space<vmem>>, vector<8x128xf32>
    tpu.vector_store %arg3[%c0_9, %c0_10], %126 {strides = array<i32>} : memref<8x128xf32, #tpu.memory_space<vmem>>, vector<8x128xf32>,
    return
  }
  func.func @transform_0(%arg0: i32) -> i32 {
    %c0_i32 = arith.constant 0 : i32
    %c0_i32_0 = arith.constant 0 : i32
    return %c0_i32 : i32
  }
  func.func @transform_1(%arg0: i32) -> (i32, i32) {
    %c0_i32 = arith.constant 0 : i32
    %c0_i32_0 = arith.constant 0 : i32
    return %arg0, %c0_i32 : i32, i32
  }
  func.func @transform_2(%arg0: i32) -> (i32, i32) {
    %c0_i32 = arith.constant 0 : i32
    %c0_i32_0 = arith.constant 0 : i32
    return %arg0, %c0_i32 : i32, i32
  }
}

</mosaic_0001>

<llo_original>
// kernel: tpu_custom_call.1
$region0: #{tpu_custom_call.1}
  #allocation0 [shape = 'u32[]', space=smem, size = 0x4, offset = 0x4, fixed_abs, tag = 'smem constant byte address 0x4 - core index']
  #allocation1 [shape = 'u32[144,128]{1,0:T(1,128)}', space=vmem, size = 0x12000, scoped, tag = 'internal scratch']
  %s0 = inlined_call_operand.hbm [shape: f32[32], index: 0, kind: input, shape index: {}]
  %s1 = inlined_call_operand.hbm [shape: f32[8,128], index: 1, kind: input, shape index: {}]
  %s2 = inlined_call_operand.hbm [shape: f32[8,128], index: 2, kind: output, shape index: {}]
  %s3 = sld [smem:[#allocation0]]
  $region26: #{tpu_custom_call.1} parent=0
    _
  %s5 = ssub.s32 1, %s3
  %s6 = scalar_select 0, %s5, %s3
  $region1: #{tpu_custom_call.1} parent=0
    #allocation2 [shape = 'u8[512]{0}', space=smem, size = 0x200, scoped, tag = 'input window, operand 0, single buffered']
    #allocation3 [shape = 's32[1]{0}', space=sflag, size = 0x4, scoped, tag = 'scoped memory for tpu_custom_call.1']
    #allocation4 [shape = 's32[1]{0}', space=sflag, size = 0x4, scoped, tag = 'scoped memory for tpu_custom_call.1']
    #allocation5 [shape = 's32[1]{0}', space=sflag, size = 0x4, scoped, tag = 'scoped memory for tpu_custom_call.1']
    #allocation6 [shape = 'u8[4096]{0}', space=vmem, size = 0x1000, scoped, tag = 'input window, operand 1, single buffered']
    #allocation7 [shape = 'u8[4096]{0}', space=vmem, size = 0x1000, scoped, tag = 'output window, operand 0, single buffered']
    %7 = vsyncpa [#allocation5], 0
    %8 = vsyncpa [#allocation3], 0
    %9 = vsyncpa [#allocation4], 0
    // Predicated region
    $region2: #{tpu_custom_call.1} parent=1 // pred_check
      _
    $region3: #{tpu_custom_call.1} parent=1 // pred_check_branch
      %11 = sbr.rel (0) target = $region5
    $region4: #{tpu_custom_call.1} parent=1 // pred_region
      %s13 = ssub.s32 16, 16
      %14 = vsyncadd [#allocation5], %s13
      %17 = dma.hbm_to_smem %s0, 16, [#allocation2], [#allocation5]
    $region5: #{tpu_custom_call.1} parent=1 // pred_fallthru
      _
    // Predicated region
    $region6: #{tpu_custom_call.1} parent=1 // pred_check
      _
    $region7: #{tpu_custom_call.1} parent=1 // pred_check_branch
      %19 = sbr.rel (0) target = $region9
    $region8: #{tpu_custom_call.1} parent=1 // pred_region
      %s21 = ssub.s32 128, 128
      %22 = vsyncadd [#allocation3], %s21
      %s24 = sshll.u32 [#allocation6], 4
      %s25 = int_to_ptr.vmem [resolvable:$true] %s24
      %27 = dma.hbm_to_vmem [thread:$0]  %s1, 128, %s25, [#allocation3]
    $region9: #{tpu_custom_call.1} parent=1 // pred_fallthru
      _
    // Predicated region
    $region10: #{tpu_custom_call.1} parent=1 // pred_check
      _
    $region11: #{tpu_custom_call.1} parent=1 // pred_check_branch
      %29 = sbr.rel (0) target = $region13
    $region12: #{tpu_custom_call.1} parent=1 // pred_region
      %30 = dma.done [#allocation5], 16
    $region13: #{tpu_custom_call.1} parent=1 // pred_fallthru
      _
    // Predicated region
    $region14: #{tpu_custom_call.1} parent=1 // pred_check
      _
    $region15: #{tpu_custom_call.1} parent=1 // pred_check_branch
      %32 = sbr.rel (0) target = $region17
    $region16: #{tpu_custom_call.1} parent=1 // pred_region
      %33 = dma.done [#allocation3], 128
    $region17: #{tpu_custom_call.1} parent=1 // pred_fallthru
      _
    %34 = sfence
    %v35 = vld [vmem:[#allocation6] sm:$0xff]
    %s36 = sld [smem:[#allocation2]]
    %v37 = vstv %s36
    %v38 = vmul.f32 %v35, %v37
    %s39 = sld [smem:[#allocation2 + $0x5]]
    %v40 = vstv %s39
    %v41 = vadd.f32 %v38, %v40
    %v42 = vmax.f32 %v41, 0.0
    %s43 = sld [smem:[#allocation2 + $0xa]]
    %v44 = vstv %s43
    %v45 = vmul.f32 %v42, %v44
    %s46 = sld [smem:[#allocation2 + $0x19]]
    %v47 = vstv %s46
    %v48 = vadd.f32 %v45, %v47
    %s49 = sld [smem:[#allocation2 + $0xf]]
    %v50 = vstv %s49
    %v51 = vmul.f32 %v42, %v50
    %s52 = sld [smem:[#allocation2 + $0x1a]]
    %v53 = vstv %s52
    %v54 = vadd.f32 %v51, %v53
    %s55 = sld [smem:[#allocation2 + $0x14]]
    %v56 = vstv %s55
    %v57 = vmul.f32 %v42, %v56
    %s58 = sld [smem:[#allocation2 + $0x1b]]
    %v59 = vstv %s58
    %v60 = vadd.f32 %v57, %v59
    %s61 = sld [smem:[#allocation2 + $0x1]]
    %v62 = vstv %s61
    %v63 = vmul.f32 %v35, %v62
    %s64 = sld [smem:[#allocation2 + $0x6]]
    %v65 = vstv %s64
    %v66 = vadd.f32 %v63, %v65
    %v67 = vmax.f32 %v66, 0.0
    %s68 = sld [smem:[#allocation2 + $0xb]]
    %v69 = vstv %s68
    %v70 = vmul.f32 %v67, %v69
    %v71 = vadd.f32 %v48, %v70
    %s72 = sld [smem:[#allocation2 + $0x10]]
    %v73 = vstv %s72
    %v74 = vmul.f32 %v67, %v73
    %v75 = vadd.f32 %v54, %v74
    %s76 = sld [smem:[#allocation2 + $0x15]]
    %v77 = vstv %s76
    %v78 = vmul.f32 %v67, %v77
    %v79 = vadd.f32 %v60, %v78
    %s80 = sld [smem:[#allocation2 + $0x2]]
    %v81 = vstv %s80
    %v82 = vmul.f32 %v35, %v81
    %s83 = sld [smem:[#allocation2 + $0x7]]
    %v84 = vstv %s83
    %v85 = vadd.f32 %v82, %v84
    %v86 = vmax.f32 %v85, 0.0
    %s87 = sld [smem:[#allocation2 + $0xc]]
    %v88 = vstv %s87
    %v89 = vmul.f32 %v86, %v88
    %v90 = vadd.f32 %v71, %v89
    %s91 = sld [smem:[#allocation2 + $0x11]]
    %v92 = vstv %s91
    %v93 = vmul.f32 %v86, %v92
    %v94 = vadd.f32 %v75, %v93
    %s95 = sld [smem:[#allocation2 + $0x16]]
    %v96 = vstv %s95
    %v97 = vmul.f32 %v86, %v96
    %v98 = vadd.f32 %v79, %v97
    %s99 = sld [smem:[#allocation2 + $0x3]]
    %v100 = vstv %s99
    %v101 = vmul.f32 %v35, %v100
    %s102 = sld [smem:[#allocation2 + $0x8]]
    %v103 = vstv %s102
    %v104 = vadd.f32 %v101, %v103
    %v105 = vmax.f32 %v104, 0.0
    %s106 = sld [smem:[#allocation2 + $0xd]]
    %v107 = vstv %s106
    %v108 = vmul.f32 %v105, %v107
    %v109 = vadd.f32 %v90, %v108
    %s110 = sld [smem:[#allocation2 + $0x12]]
    %v111 = vstv %s110
    %v112 = vmul.f32 %v105, %v111
    %v113 = vadd.f32 %v94, %v112
    %s114 = sld [smem:[#allocation2 + $0x17]]
    %v115 = vstv %s114
    %v116 = vmul.f32 %v105, %v115
    %v117 = vadd.f32 %v98, %v116
    %s118 = sld [smem:[#allocation2 + $0x4]]
    %v119 = vstv %s118
    %v120 = vmul.f32 %v35, %v119
    %s121 = sld [smem:[#allocation2 + $0x9]]
    %v122 = vstv %s121
    %v123 = vadd.f32 %v120, %v122
    %v124 = vmax.f32 %v123, 0.0
    %s125 = sld [smem:[#allocation2 + $0xe]]
    %v126 = vstv %s125
    %v127 = vmul.f32 %v124, %v126
    %v128 = vadd.f32 %v109, %v127
    %s129 = sld [smem:[#allocation2 + $0x13]]
    %v130 = vstv %s129
    %v131 = vmul.f32 %v124, %v130
    %v132 = vadd.f32 %v113, %v131
    %s133 = sld [smem:[#allocation2 + $0x18]]
    %v134 = vstv %s133
    %v135 = vmul.f32 %v124, %v134
    %v136 = vadd.f32 %v117, %v135
    %v137 = vmax.f32 %v128, 0.0
    %s138 = sld [smem:[#allocation2 + $0x1c]]
    %v139 = vstv %s138
    %v140 = vmul.f32 %v137, %v139
    %s141 = sld [smem:[#allocation2 + $0x1f]]
    %v142 = vstv %s141
    %v143 = vadd.f32 %v140, %v142
    %v144 = vmax.f32 %v132, 0.0
    %s145 = sld [smem:[#allocation2 + $0x1d]]
    %v146 = vstv %s145
    %v147 = vmul.f32 %v144, %v146
    %v148 = vadd.f32 %v143, %v147
    %v149 = vmax.f32 %v136, 0.0
    %s150 = sld [smem:[#allocation2 + $0x1e]]
    %v151 = vstv %s150
    %v152 = vmul.f32 %v149, %v151
    %v153 = vadd.f32 %v148, %v152
    %154 = vst [vmem:[#allocation7] sm:$0xff] %v153
    // Predicated region
    $region18: #{tpu_custom_call.1} parent=1 // pred_check
      _
    $region19: #{tpu_custom_call.1} parent=1 // pred_check_branch
      %156 = sbr.rel (0) target = $region21
    $region20: #{tpu_custom_call.1} parent=1 // pred_region
      %s158 = ssub.s32 128, 128
      %159 = vsyncadd [#allocation4], %s158
      %s161 = sshll.u32 [#allocation7], 4
      %s162 = int_to_ptr.vmem [resolvable:$true] %s161
      %164 = dma.vmem_to_hbm [thread:$0]  %s162, 128, %s2, [#allocation4]
    $region21: #{tpu_custom_call.1} parent=1 // pred_fallthru
      _
    // Predicated region
    $region22: #{tpu_custom_call.1} parent=1 // pred_check
      _
    $region23: #{tpu_custom_call.1} parent=1 // pred_check_branch
      %166 = sbr.rel (0) target = $region25
    $region24: #{tpu_custom_call.1} parent=1 // pred_region
      %167 = dma.done [#allocation4], 128
    $region25: #{tpu_custom_call.1} parent=1 // pred_fallthru
      _
    %168 = vsyncpa [#allocation3], 1
    %169 = vsyncpa [#allocation4], 1
    %170 = vsyncpa [#allocation5], 1

</llo_original>
